<compile_context>
chip_gen: v7x
topology: tpu7x:2x2x1
jax: 0.10.0
libtpu: 0.0.40
codegen_flags: <defaults>
</compile_context>

<pallas_src>
import functools

import jax
import jax.numpy as jnp
from jax.experimental import pallas as pl
from jax.experimental.pallas import tpu as pltpu

LANE = 128


def _round_up(x, m):
    return ((x + m - 1) // m) * m


def _pad_axis(a, target, axis):
    if a.shape[axis] == target:
        return a
    widths = [(0, 0)] * a.ndim
    widths[axis] = (0, target - a.shape[axis])
    return jnp.pad(a, widths)


def _pad2d(w, rows, cols):
    return _pad_axis(_pad_axis(w, rows, 0), cols, 1)


def _pick_row_tile(n):
    """Largest lane-friendly row tile that divides n (so no row pad/slice)."""
    for c in (512, 256, 128, 64, 32, 16):
        if n % c == 0:
            return c
    return n                      # block equals the full dim -> always legal


def _pick_rnn_tiles(batch, hidden, seq_len, t_chunk_req, vmem_budget):
    """Pick (batch tile, time chunk) from an explicit VMEM byte budget."""
    # Batch tile: large multiple of 8 dividing batch, keeping >= 2 tiles when
    # possible (so the leading "parallel" axis still splits across the 2
    # TensorCores on v7x); otherwise the whole batch.
    bt = batch
    if batch > 8 and batch % 8 == 0:
        for c in (128, 64, 32, 16, 8):
            if batch % c == 0 and batch // c >= 2:
                bt = c
                break
    t_chunk = max(1, min(t_chunk_req, seq_len))

    def vmem_need(tc):
        return (4 * bt * tc * hidden * 4      # pre + out chunks, double-buffered, f32
                + 2 * hidden * hidden * 2     # resident W_hh + W_fc (bf16, single copy)
                + bt * hidden * 4)            # hidden-state scratch

    while t_chunk > 8 and vmem_need(t_chunk) > vmem_budget:
        t_chunk = (t_chunk + 1) // 2
    return bt, t_chunk


# ----------------------------------------------------------------------------
# Kernel 1: fused Linear (+ optional clipped ReLU), bf16 MXU / f32 accumulate.
# Used for the ff_layers and the hoisted RNN input projection (x @ W_ih + b).
# ----------------------------------------------------------------------------
def _linear_kernel(x_ref, w_ref, b_ref, o_ref, *, max_val):
    x = x_ref[...].astype(jnp.bfloat16)
    y = jnp.dot(x, w_ref[...], preferred_element_type=jnp.float32)
    y = y + b_ref[...]
    if max_val is not None:
        y = jnp.clip(y, 0.0, float(max_val))
    o_ref[...] = y.astype(o_ref.dtype)


def linear_act(x2d, w, b, max_val, *, out_dtype=jnp.float32,
               weight_budget=16 << 20):
    """y = clip(x @ w + b, 0, max_val); no clip if max_val is None.

    x2d: [N, Din] (f32 or bf16), w: [Din, Dout] bf16, b: [1, Dout] f32.
    Din/Dout are multiples of 128; the row tile divides N (picked by caller's
    padding), so there is no per-call pad/slice of the activations.
    """
    n, din = x2d.shape
    dout = w.shape[1]
    tm = _pick_row_tile(n)

    # Resident weight when it fits the budget: constant-index full-width block
    # -> fetched from HBM exactly once, only activations stream.  Fallback:
    # column-tiled with the column axis OUTER so the weight block stays
    # constant across the inner row sweep (fetched once per column tile).
    tn = dout
    if din * dout * w.dtype.itemsize > weight_budget:
        for c in (2048, 1024, 512, 256, 128):
            if dout % c == 0 and din * c * w.dtype.itemsize <= weight_budget:
                tn = c
                break
    n_rows, n_cols = n // tm, dout // tn

    vmem_need = 2 * (tm * din * x2d.dtype.itemsize
                     + din * tn * w.dtype.itemsize
                     + tm * tn * jnp.dtype(out_dtype).itemsize
                     + tn * 4)
    return pl.pallas_call(
        functools.partial(_linear_kernel, max_val=max_val),
        out_shape=jax.ShapeDtypeStruct((n, dout), out_dtype),
        grid=(n_cols, n_rows),
        in_specs=[
            pl.BlockSpec((tm, din), lambda j, i: (i, 0)),   # activations
            pl.BlockSpec((din, tn), lambda j, i: (0, j)),   # weight (resident)
            pl.BlockSpec((1, tn), lambda j, i: (0, j)),     # bias
        ],
        out_specs=pl.BlockSpec((tm, tn), lambda j, i: (i, j)),
        compiler_params=pltpu.CompilerParams(
            dimension_semantics=("parallel", "parallel"),
            vmem_limit_bytes=int(max(vmem_need + (8 << 20), 32 << 20))),
    )(x2d, w, b)


# ----------------------------------------------------------------------------
# Kernel 2: tanh-RNN recurrence chunked over time, fused with the packed-RNN
# pad masking (t >= length -> 0), the post-RNN CReLU, the final fc and its
# CReLU.  W_hh / W_fc live as single-copy bf16 residents in VMEM scratch.
# ----------------------------------------------------------------------------
def _rnn_fc_kernel(maxlen_ref,              # SMEM (n_btiles,) int32 (prefetch)
                   len_ref,                 # VMEM (bt, 1) int32
                   pre_ref,                 # VMEM (bt, t_chunk*H) f32
                   whh_hbm, wfc_hbm,        # HBM  (H, H) bf16 (pl.ANY)
                   bfc_ref,                 # VMEM (1, H) f32
                   o_ref,                   # VMEM (bt, t_chunk*H) f32
                   whh_vmem, wfc_vmem,      # VMEM scratch (H, H) bf16
                   h_ref,                   # VMEM scratch (bt, H) f32
                   sem,                     # DMA semaphores (2,)
                   *, t_chunk, hidden, max_val):
    b = pl.program_id(0)
    c = pl.program_id(1)

    @pl.when(c == 0)
    def _():
        # New batch tile: reset the recurrent state and (re)load the resident
        # weights into single-copy VMEM scratch (hand single-buffered).
        h_ref[...] = jnp.zeros_like(h_ref)
        cp_hh = pltpu.make_async_copy(whh_hbm, whh_vmem, sem.at[0])
        cp_fc = pltpu.make_async_copy(wfc_hbm, wfc_vmem, sem.at[1])
        cp_hh.start()
        cp_fc.start()
        cp_hh.wait()
        cp_fc.wait()

    t0 = c * t_chunk
    bfc = bfc_ref[...]                                   # (1, H) f32
    fc_pad_row = jnp.clip(bfc, 0.0, max_val)             # fc(0) output rows

    @pl.when(t0 < maxlen_ref[b])
    def _live_chunk():
        lens = len_ref[...]                              # (bt, 1) int32
        whh = whh_vmem[...]
        wfc = wfc_vmem[...]
        h = h_ref[...]
        for s in range(t_chunk):                         # static in-chunk unroll
            x_t = pre_ref[:, s * hidden:(s + 1) * hidden]          # (bt, H) f32
            h = jnp.tanh(x_t + jnp.dot(h.astype(jnp.bfloat16), whh,
                                       preferred_element_type=jnp.float32))
            # pad_packed_sequence zeros positions t >= length BEFORE the fc,
            # so padded positions end up as clip(b_fc) -- same as PyTorch.
            valid = (t0 + s) < lens                                 # (bt, 1)
            r = jnp.where(valid, jnp.clip(h, 0.0, max_val), 0.0)
            y = jnp.dot(r.astype(jnp.bfloat16), wfc,
                        preferred_element_type=jnp.float32) + bfc
            o_ref[:, s * hidden:(s + 1) * hidden] = jnp.clip(y, 0.0, max_val)
        h_ref[...] = h

    @pl.when(t0 >= maxlen_ref[b])
    def _dead_chunk():
        # Every row of this batch tile is already past its length: skip all
        # matmuls/tanh and emit the constant clip(b_fc) rows the module makes.
        fill = jnp.broadcast_to(fc_pad_row, (o_ref.shape[0], hidden))
        for s in range(t_chunk):
            o_ref[:, s * hidden:(s + 1) * hidden] = fill


def rnn_fc_crelu(pre_flat, lengths_col, tile_maxlen, w_hh, w_fc, b_fc,
                 *, bt, t_chunk, hidden, max_val):
    """pre_flat: [B, M_p*H] f32 (= x@W_ih + b), lengths_col: [B, 1] int32,
    tile_maxlen: [B//bt] int32, w_hh/w_fc: [H, H] bf16, b_fc: [1, H] f32."""
    batch, mh = pre_flat.shape
    n_chunks = mh // (t_chunk * hidden)
    n_btiles = batch // bt
    vmem_need = (4 * bt * t_chunk * hidden * 4     # pre + out, double-buffered
                 + 2 * hidden * hidden * 2         # resident weights
                 + bt * hidden * 4                 # h scratch
                 + 4 * hidden * 4)
    return pl.pallas_call(
        functools.partial(_rnn_fc_kernel, t_chunk=t_chunk, hidden=hidden,
                          max_val=float(max_val)),
        out_shape=jax.ShapeDtypeStruct((batch, mh), jnp.float32),
        grid_spec=pltpu.PrefetchScalarGridSpec(
            num_scalar_prefetch=1,                 # tile_maxlen -> SMEM
            grid=(n_btiles, n_chunks),
            in_specs=[
                pl.BlockSpec((bt, 1), lambda b, c, ml: (b, 0)),            # lengths
                pl.BlockSpec((bt, t_chunk * hidden), lambda b, c, ml: (b, c)),
                pl.BlockSpec(memory_space=pl.ANY),                         # W_hh
                pl.BlockSpec(memory_space=pl.ANY),                         # W_fc
                pl.BlockSpec((1, hidden), lambda b, c, ml: (0, 0)),        # b_fc
            ],
            out_specs=pl.BlockSpec((bt, t_chunk * hidden),
                                   lambda b, c, ml: (b, c)),
            scratch_shapes=[
                pltpu.VMEM((hidden, hidden), jnp.bfloat16),   # W_hh resident
                pltpu.VMEM((hidden, hidden), jnp.bfloat16),   # W_fc resident
                pltpu.VMEM((bt, hidden), jnp.float32),        # hidden state
                pltpu.SemaphoreType.DMA((2,)),
            ]),
        compiler_params=pltpu.CompilerParams(
            # batch tiles independent -> megacore-parallel; time chunks carry
            # the recurrent state -> sequential.
            dimension_semantics=("parallel", "arbitrary"),
            vmem_limit_bytes=int(max(vmem_need + (8 << 20), 32 << 20))),
    )(tile_maxlen, lengths_col, pre_flat, w_hh, w_fc, b_fc)


# ----------------------------------------------------------------------------
# Parameters (deterministic synthetic init, PyTorch-equivalent shapes) and
# the full encoder forward.
# ----------------------------------------------------------------------------
def init_params(key, in_features, hidden_size, n_linear_layers):
    ks = jax.random.split(key, 2 * n_linear_layers + 6)
    scale = 0.1
    params = {"ff": []}
    kidx = 0
    d_in = in_features
    for _ in range(n_linear_layers):
        w = scale * jax.random.normal(ks[kidx], (d_in, hidden_size),
                                      jnp.float32); kidx += 1
        b = scale * jax.random.normal(ks[kidx], (1, hidden_size),
                                      jnp.float32); kidx += 1
        params["ff"].append((w, b))
        d_in = hidden_size
    # NOTE: kernels compute x @ W, i.e. W is stored [in, out]
    # (the transpose of PyTorch's weight_ih_l0 / weight layout).
    params["rnn_wih"] = scale * jax.random.normal(
        ks[kidx], (hidden_size, hidden_size), jnp.float32); kidx += 1
    params["rnn_whh"] = scale * jax.random.normal(
        ks[kidx], (hidden_size, hidden_size), jnp.float32); kidx += 1
    # b_ih + b_hh folded into one bias vector.
    params["rnn_b"] = scale * jax.random.normal(
        ks[kidx], (1, hidden_size), jnp.float32); kidx += 1
    params["fc_w"] = scale * jax.random.normal(
        ks[kidx], (hidden_size, hidden_size), jnp.float32); kidx += 1
    params["fc_b"] = scale * jax.random.normal(
        ks[kidx], (1, hidden_size), jnp.float32); kidx += 1
    return params


def deepspeech_v1_encoder(params, x, mask, *, max_clip_value, hidden_size,
                          t_chunk=32, rnn_vmem_budget=40 << 20):
    """x: [B, M, d] float32, mask: [B, M] bool.  Returns ([B, M, H], [B])."""
    B, M, d_in = x.shape
    lengths = jnp.sum(mask.astype(jnp.int32), axis=-1)        # [B]

    H = hidden_size
    H_p = _round_up(H, LANE)
    d_p = _round_up(d_in, LANE)

    # RNN tiles from an explicit per-generation VMEM budget (v7x has 64 MiB
    # physical; 40 MiB leaves headroom for internal scratch on all gens).
    bt, tc = _pick_rnn_tiles(B, H_p, M, t_chunk, rnn_vmem_budget)
    M_p = _round_up(M, tc)

    # Zero-pad parameters to lane-dense (x128) shapes (zero padding is exact
    # through linear / tanh / clip) and cast matmul weights to bf16.
    ff_p = []
    prev = d_p
    for (w, b) in params["ff"]:
        ff_p.append((_pad2d(w, prev, H_p).astype(jnp.bfloat16),
                     _pad_axis(b, H_p, 1)))
        prev = H_p
    wih = _pad2d(params["rnn_wih"], H_p, H_p).astype(jnp.bfloat16)
    whh = _pad2d(params["rnn_whh"], H_p, H_p).astype(jnp.bfloat16)
    b_rnn = _pad_axis(params["rnn_b"], H_p, 1)
    fcw = _pad2d(params["fc_w"], H_p, H_p).astype(jnp.bfloat16)
    fcb = _pad_axis(params["fc_b"], H_p, 1)

    # Pad the (small-d) input once in time + features; no further activation
    # pads/slices until the final output slice.
    x_p = _pad_axis(_pad_axis(x.astype(jnp.float32), M_p, 1), d_p, 2)
    h = x_p.reshape(B * M_p, d_p).astype(jnp.bfloat16)

    # Feed-forward stack (Dropout is identity in eval mode); bf16 storage.
    for (w, b) in ff_p:
        h = linear_act(h, w, b, max_clip_value, out_dtype=jnp.bfloat16)

    # Hoisted, time-parallel RNN input projection (no activation), f32 out.
    pre = linear_act(h, wih, b_rnn, None, out_dtype=jnp.float32)   # [B*M_p, H_p]
    pre_flat = pre.reshape(B, M_p * H_p)                           # free reshape

    lengths_col = lengths.reshape(B, 1)
    n_btiles = B // bt
    tile_maxlen = jnp.max(lengths.reshape(n_btiles, bt), axis=1).astype(jnp.int32)

    # Packed tanh-RNN + CReLU + pad-masking + fc + CReLU, chunked over time.
    # TODO(synk): bidirectional=True (backward recurrence with per-sequence
    # reversal by length) is not implemented; this config pins it to False.
    out_flat = rnn_fc_crelu(pre_flat, lengths_col, tile_maxlen, whh, fcw, fcb,
                            bt=bt, t_chunk=tc, hidden=H_p,
                            max_val=max_clip_value)
    out = out_flat.reshape(B, M_p, H_p)[:, :M, :H]                 # drop pads
    return out, lengths


# ----------------------------------------------------------------------------
# Pure-JAX f32 reference (for a loose numerical sanity check).
# ----------------------------------------------------------------------------
def _reference_forward(params, x, mask, *, max_clip_value):
    lengths = jnp.sum(mask.astype(jnp.int32), axis=-1)
    h = x.astype(jnp.float32)
    for w, b in params["ff"]:
        h = jnp.clip(h @ w + b, 0.0, float(max_clip_value))
    B, M = h.shape[0], h.shape[1]
    H = params["rnn_whh"].shape[0]

    def step(hs, x_t):
        hs = jnp.tanh(x_t @ params["rnn_wih"] + params["rnn_b"]
                      + hs @ params["rnn_whh"])
        return hs, hs

    hs0 = jnp.zeros((B, H), jnp.float32)
    _, outs = jax.lax.scan(step, hs0, jnp.swapaxes(h, 0, 1))
    rnn_out = jnp.swapaxes(outs, 0, 1)                       # (B, M, H)
    t = jnp.arange(M)[None, :, None]
    rnn_out = jnp.where(t < lengths[:, None, None], rnn_out, 0.0)
    out = jnp.clip(rnn_out, 0.0, float(max_clip_value))
    out = jnp.clip(out @ params["fc_w"] + params["fc_b"],
                   0.0, float(max_clip_value))
    return out, lengths


if __name__ == "__main__":
    # Module hyper-params (bidirectional=False, rnn_type="rnn", eval mode).
    B, M = 2, 8
    in_features = 16
    hidden_size = 32
    n_linear_layers = 2
    max_clip_value = 20

    key = jax.random.PRNGKey(0)
    k_x, k_p = jax.random.split(key)
    x = jax.random.normal(k_x, (B, M, in_features), jnp.float32)
    # First sequence full length, second padded to length 6.
    mask = jnp.array([[True] * M,
                      [True] * 6 + [False] * 2], dtype=jnp.bool_)

    params = init_params(k_p, in_features, hidden_size, n_linear_layers)

    out, lengths = deepspeech_v1_encoder(
        params, x, mask, max_clip_value=max_clip_value,
        hidden_size=hidden_size)
    out = jax.block_until_ready(out)
    lengths = jax.block_until_ready(lengths)

    assert out.shape == (B, M, hidden_size)
    assert lengths.shape == (B,)

    # Loose tolerance: kernels use bf16 MXU operands with f32 accumulation.
    ref, ref_len = _reference_forward(params, x, mask,
                                      max_clip_value=max_clip_value)
    assert bool(jnp.all(ref_len == lengths))
    err = float(jnp.max(jnp.abs(out - ref)))
    assert err < 0.1, f"max abs err {err}"
    print("KERNEL_OK")
</pallas_src>

<mosaic_0001>
module attributes {stable_mosaic.version = 11 : i64} {
  func.func @_linear_kernel(%arg0: i32, %arg1: i32, %arg2: memref<16x128xbf16, #tpu.memory_space<vmem>>, %arg3: memref<128x128xbf16, #tpu.memory_space<vmem>>, %arg4: memref<1x128xf32, #tpu.memory_space<vmem>>, %arg5: memref<16x128xbf16, #tpu.memory_space<vmem>>) attributes {dimension_semantics = [#tpu.dimension_semantics<parallel>, #tpu.dimension_semantics<parallel>], iteration_bounds = array<i64: 1, 1>, scalar_prefetch = 0 : i64, scratch_operands = 0 : i64, tpu.core_type = #tpu.core_type<tc>, window_params = [{transform_indices = @transform_0, window_bounds = array<i64: 16, 128>}, {transform_indices = @transform_1, window_bounds = array<i64: 128, 128>}, {transform_indices = @transform_2, window_bounds = array<i64: 1, 128>}, {transform_indices = @transform_3, window_bounds = array<i64: 16, 128>}]} {
    %c0 = arith.constant 0 : index
    %c0_0 = arith.constant 0 : index
    %0 = vector.load %arg2[%c0, %c0_0] : memref<16x128xbf16, #tpu.memory_space<vmem>>, vector<16x128xbf16>
    %c0_1 = arith.constant 0 : index
    %c0_2 = arith.constant 0 : index
    %1 = vector.load %arg3[%c0_1, %c0_2] : memref<128x128xbf16, #tpu.memory_space<vmem>>, vector<128x128xbf16>
    %cst = arith.constant dense<0.000000e+00> : vector<16x128xf32>
    %2 = tpu.matmul %0, %1, %cst {dimension_numbers = #tpu.dot_dimension_numbers<[1], [0], [0], [1], [0, 0, 1, 1], [], []>} : vector<16x128xbf16>, vector<128x128xbf16>, vector<16x128xf32> -> vector<16x128xf32>
    %c0_3 = arith.constant 0 : index
    %c0_4 = arith.constant 0 : index
    %3 = vector.load %arg4[%c0_3, %c0_4] : memref<1x128xf32, #tpu.memory_space<vmem>>, vector<1x128xf32>
    %4 = vector.broadcast %3 : vector<1x128xf32> to vector<16x128xf32>
    %5 = arith.addf %2, %4 : vector<16x128xf32>
    %cst_5 = arith.constant 0.000000e+00 : f32
    %cst_6 = arith.constant 2.000000e+01 : f32
    %6 = vector.broadcast %cst_5 : f32 to vector<16x128xf32>
    %7 = arith.maximumf %6, %5 : vector<16x128xf32>
    %8 = vector.broadcast %cst_6 : f32 to vector<16x128xf32>
    %9 = arith.minimumf %8, %7 : vector<16x128xf32>
    %10 = arith.truncf %9 : vector<16x128xf32> to vector<16x128xbf16>
    %c0_7 = arith.constant 0 : index
    %c0_8 = arith.constant 0 : index
    %11 = vector.load %arg5[%c0_7, %c0_8] : memref<16x128xbf16, #tpu.memory_space<vmem>>, vector<16x128xbf16>
    tpu.vector_store %arg5[%c0_7, %c0_8], %10 {strides = array<i32>} : memref<16x128xbf16, #tpu.memory_space<vmem>>, vector<16x128xbf16>,
    return
  }
  func.func @transform_0(%arg0: i32, %arg1: i32) -> (i32, i32) {
    %c0_i32 = arith.constant 0 : i32
    %c0_i32_0 = arith.constant 0 : i32
    return %arg1, %c0_i32 : i32, i32
  }
  func.func @transform_1(%arg0: i32, %arg1: i32) -> (i32, i32) {
    %c0_i32 = arith.constant 0 : i32
    %c0_i32_0 = arith.constant 0 : i32
    return %c0_i32, %arg0 : i32, i32
  }
  func.func @transform_2(%arg0: i32, %arg1: i32) -> (i32, i32) {
    %c0_i32 = arith.constant 0 : i32
    %c0_i32_0 = arith.constant 0 : i32
    return %c0_i32, %arg0 : i32, i32
  }
  func.func @transform_3(%arg0: i32, %arg1: i32) -> (i32, i32) {
    %c0_i32 = arith.constant 0 : i32
    return %arg1, %arg0 : i32, i32
  }
}

</mosaic_0001>

<llo_original>
// kernel: tpu_custom_call.1
$region0: #{tpu_custom_call.1}
  #allocation0 [shape = 'u32[]', space=smem, size = 0x4, offset = 0x4, fixed_abs, tag = 'smem constant byte address 0x4 - core index']
  #allocation1 [shape = 'u32[144,128]{1,0:T(1,128)}', space=vmem, size = 0x12000, scoped, tag = 'internal scratch']
  %s0 = inlined_call_operand.hbm [shape: bf16[16,128], index: 0, kind: input, shape index: {}]
  %s1 = inlined_call_operand.hbm [shape: bf16[128,128], index: 1, kind: input, shape index: {}]
  %s2 = inlined_call_operand.vmem [shape: f32[1,128], index: 2, kind: input, shape index: {}]
  %s3 = inlined_call_operand.hbm [shape: bf16[16,128], index: 3, kind: output, shape index: {}]
  %s4 = sld [smem:[#allocation0]]
  $region30: #{tpu_custom_call.1} parent=0
    _
  %s6 = ssub.s32 1, %s4
  %s7 = scalar_select 0, %s6, %s4
  $region1: #{tpu_custom_call.1} parent=0
    #allocation2 [shape = 'u8[4096]{0}', space=vmem, size = 0x1000, scoped, tag = 'input window, operand 0, single buffered']
    #allocation3 [shape = 's32[1]{0}', space=sflag, size = 0x4, scoped, tag = 'scoped memory for tpu_custom_call.1']
    #allocation4 [shape = 's32[1]{0}', space=sflag, size = 0x4, scoped, tag = 'scoped memory for tpu_custom_call.1']
    #allocation5 [shape = 'u8[32768]{0}', space=vmem, size = 0x8000, scoped, tag = 'input window, operand 1, single buffered']
    #allocation6 [shape = 's32[1]{0}', space=sflag, size = 0x4, scoped, tag = 'scoped memory for tpu_custom_call.1']
    #allocation7 [shape = 'u8[4096]{0}', space=vmem, size = 0x1000, scoped, tag = 'output window, operand 0, single buffered']
    %8 = vsyncpa [#allocation3], 0
    %9 = vsyncpa [#allocation6], 0
    %10 = vsyncpa [#allocation4], 0
    // Predicated region
    $region2: #{tpu_custom_call.1} parent=1 // pred_check
      _
    $region3: #{tpu_custom_call.1} parent=1 // pred_check_branch
      %12 = sbr.rel (0) target = $region5
    $region4: #{tpu_custom_call.1} parent=1 // pred_region
      %s14 = ssub.s32 128, 128
      %15 = vsyncadd [#allocation3], %s14
      %s16 = sshll.u32 [#allocation2], 4
      %s17 = int_to_ptr.vmem [resolvable:$true] %s16
      %22 = dma.hbm_to_vmem [thread:$0]  %s0, 128, %s17, [#allocation3], 64, 64, 4
    $region5: #{tpu_custom_call.1} parent=1 // pred_fallthru
      _
    // Predicated region
    $region6: #{tpu_custom_call.1} parent=1 // pred_check
      _
    $region7: #{tpu_custom_call.1} parent=1 // pred_check_branch
      %24 = sbr.rel (0) target = $region9
    $region8: #{tpu_custom_call.1} parent=1 // pred_region
      %s26 = ssub.s32 1024, 1024
      %27 = vsyncadd [#allocation6], %s26
      %s28 = sshll.u32 [#allocation5], 4
      %s29 = int_to_ptr.vmem [resolvable:$true] %s28
      %34 = dma.hbm_to_vmem [thread:$0]  %s1, 1024, %s29, [#allocation6], 64, 64, 4
    $region9: #{tpu_custom_call.1} parent=1 // pred_fallthru
      _
    // Predicated region
    $region10: #{tpu_custom_call.1} parent=1 // pred_check
      _
    $region11: #{tpu_custom_call.1} parent=1 // pred_check_branch
      %36 = sbr.rel (0) target = $region13
    $region12: #{tpu_custom_call.1} parent=1 // pred_region
      _
    $region13: #{tpu_custom_call.1} parent=1 // pred_fallthru
      _
    // Predicated region
    $region14: #{tpu_custom_call.1} parent=1 // pred_check
      _
    $region15: #{tpu_custom_call.1} parent=1 // pred_check_branch
      %38 = sbr.rel (0) target = $region17
    $region16: #{tpu_custom_call.1} parent=1 // pred_region
      %39 = dma.done [#allocation3], 128
    $region17: #{tpu_custom_call.1} parent=1 // pred_fallthru
      _
    // Predicated region
    $region18: #{tpu_custom_call.1} parent=1 // pred_check
      _
    $region19: #{tpu_custom_call.1} parent=1 // pred_check_branch
      %41 = sbr.rel (0) target = $region21
    $region20: #{tpu_custom_call.1} parent=1 // pred_region
      %42 = dma.done [#allocation6], 1024
    $region21: #{tpu_custom_call.1} parent=1 // pred_fallthru
      _
    %v44 = vld [vmem:[#allocation2] sm:$0xf]
    %v45 = vld [vmem:[#allocation2 + $0x4] sm:$0xf]
    %v46 = vld [vmem:[#allocation5] sm:$0xf]
    %v47 = vld [vmem:[#allocation5 + $0x4] sm:$0xf]
    %v48 = vld [vmem:[#allocation5 + $0x8] sm:$0xf]
    %v49 = vld [vmem:[#allocation5 + $0xc] sm:$0xf]
    %v50 = vld [vmem:[#allocation5 + $0x10] sm:$0xf]
    %v51 = vld [vmem:[#allocation5 + $0x14] sm:$0xf]
    %v52 = vld [vmem:[#allocation5 + $0x18] sm:$0xf]
    %v53 = vld [vmem:[#allocation5 + $0x1c] sm:$0xf]
    %v54 = vld [vmem:[#allocation5 + $0x20] sm:$0xf]
    %v55 = vld [vmem:[#allocation5 + $0x24] sm:$0xf]
    %v56 = vld [vmem:[#allocation5 + $0x28] sm:$0xf]
    %v57 = vld [vmem:[#allocation5 + $0x2c] sm:$0xf]
    %v58 = vld [vmem:[#allocation5 + $0x30] sm:$0xf]
    %v59 = vld [vmem:[#allocation5 + $0x34] sm:$0xf]
    %v60 = vld [vmem:[#allocation5 + $0x38] sm:$0xf]
    %v61 = vld [vmem:[#allocation5 + $0x3c] sm:$0xf]
    %v62 = vld [vmem:[%s2] sm:$0x1]
    %v64 = vlaneseq
    %v65 = vshrl.u32 %v64, 7
    %v66 = vsub.s32 0, %v65
    %v67 = vrot.slane %v62, %v66
    %v71 = vunpack.c.l.b16 %v44
    %v72 = vunpack.c.l.b16 %v45
    %v73 = vpack.c.b16 %v72, %v71
    %v91 = vunpack.c.l.b16 %v46
    %v92 = vunpack.c.l.b16 %v47
    %v93 = vunpack.c.l.b16 %v48
    %v94 = vunpack.c.l.b16 %v49
    %v95 = vunpack.c.l.b16 %v50
    %v96 = vunpack.c.l.b16 %v51
    %v97 = vunpack.c.l.b16 %v52
    %v98 = vunpack.c.l.b16 %v53
    %v99 = vunpack.c.l.b16 %v54
    %v100 = vunpack.c.l.b16 %v55
    %v101 = vunpack.c.l.b16 %v56
    %v102 = vunpack.c.l.b16 %v57
    %v103 = vunpack.c.l.b16 %v58
    %v104 = vunpack.c.l.b16 %v59
    %v105 = vunpack.c.l.b16 %v60
    %v106 = vunpack.c.l.b16 %v61
    %v107 = vpack.c.b16 %v92, %v91
    %v108 = vpack.c.b16 %v94, %v93
    %v109 = vpack.c.b16 %v96, %v95
    %v110 = vpack.c.b16 %v98, %v97
    %v111 = vpack.c.b16 %v100, %v99
    %v112 = vpack.c.b16 %v102, %v101
    %v113 = vpack.c.b16 %v104, %v103
    %v114 = vpack.c.b16 %v106, %v105
    %123 = vmatprep.subr.bf16.mxu0 0
    %124 = vmatpush1.bf16.msra.mxu0 %v107
    %125 = vmatprep.subr.bf16.mxu0 0
    %126 = vmatpush1.bf16.msra.mxu0 %v108
    %127 = vmatprep.subr.bf16.mxu0 0
    %128 = vmatpush1.bf16.msra.mxu0 %v109
    %129 = vmatprep.subr.bf16.mxu0 0
    %130 = vmatpush1.bf16.msra.mxu0 %v110
    %131 = vmatprep.subr.bf16.mxu0 0
    %132 = vmatpush1.bf16.msra.mxu0 %v111
    %133 = vmatprep.subr.bf16.mxu0 0
    %134 = vmatpush1.bf16.msra.mxu0 %v112
    %135 = vmatprep.subr.bf16.mxu0 0
    %136 = vmatpush1.bf16.msra.mxu0 %v113
    %137 = vmatprep.subr.bf16.mxu0 0
    %138 = vmatpush1.bf16.msra.mxu0 %v114
    %139 = vmatprep.subr.bf16.mxu0 0
    %140 = vmatpush1.bf16.msra.mxu0 0
    %141 = vmatprep.subr.bf16.mxu0 0
    %142 = vmatpush1.bf16.msra.mxu0 0
    %143 = vmatprep.subr.bf16.mxu0 0
    %144 = vmatpush1.bf16.msra.mxu0 0
    %145 = vmatprep.subr.bf16.mxu0 0
    %146 = vmatpush1.bf16.msra.mxu0 0
    %147 = vmatprep.subr.bf16.mxu0 0
    %148 = vmatpush1.bf16.msra.mxu0 0
    %149 = vmatprep.subr.bf16.mxu0 0
    %150 = vmatpush1.bf16.msra.mxu0 0
    %151 = vmatprep.subr.bf16.mxu0 0
    %152 = vmatpush1.bf16.msra.mxu0 0
    %153 = vmatprep.subr.bf16.mxu0 0
    %154 = vmatpush1.bf16.msra.mxu0 0
    %155 = vmatprep.mubr.bf16.mxu0 0
    %156 = vmatmul.mubr.bf16.gmra.mrb[0].mxu0 %v73
    %v157 = vpop.f32.mrb[0].mxu0
    %v158 = vadd.f32 %v67, %v157
    %v159 = vpop.f32.mrb[0].mxu0
    %v160 = vpop.f32.mrb[0].mxu0
    %v161 = vadd.f32 %v67, %v160
    %v162 = vpop.f32.mrb[0].mxu0
    %163 = vdwg.mxu0
    %v164 = vmax.f32 %v158, 0.0
    %v165 = vmax.f32 %v161, 0.0
    %v166 = vmin.f32 %v164, 20.0
    %v167 = vmin.f32 %v165, 20.0
    %v168 = vpack.c.bf16 %v167, %v166
    %v170 = vunpack.c.l.b16 %v168
    %v171 = vunpack.c.h.b16 %v168
    %v172 = vpack.c.b16 %v170, %v170
    %v173 = vpack.c.b16 %v171, %v171
    %176 = vst [vmem:[#allocation7] sm:$0xf] %v172
    %177 = vst [vmem:[#allocation7 + $0x4] sm:$0xf] %v173
    // Predicated region
    $region22: #{tpu_custom_call.1} parent=1 // pred_check
      _
    $region23: #{tpu_custom_call.1} parent=1 // pred_check_branch
      %179 = sbr.rel (0) target = $region25
    $region24: #{tpu_custom_call.1} parent=1 // pred_region
      %s181 = ssub.s32 128, 128
      %182 = vsyncadd [#allocation4], %s181
      %s183 = sshll.u32 [#allocation7], 4
      %s184 = int_to_ptr.vmem [resolvable:$true] %s183
      %189 = dma.vmem_to_hbm [thread:$0]  %s184, 128, %s3, [#allocation4], 64, 64, 4
    $region25: #{tpu_custom_call.1} parent=1 // pred_fallthru
      _
    // Predicated region
    $region26: #{tpu_custom_call.1} parent=1 // pred_check
      _
    $region27: #{tpu_custom_call.1} parent=1 // pred_check_branch
      %191 = sbr.rel (0) target = $region29
    $region28: #{tpu_custom_call.1} parent=1 // pred_region
      %192 = dma.done [#allocation4], 128
    $region29: #{tpu_custom_call.1} parent=1 // pred_fallthru
      _
    %193 = vsyncpa [#allocation3], 1
    %194 = vsyncpa [#allocation6], 1
    %195 = vsyncpa [#allocation4], 1

</llo_original>
